<compile_context>
chip_gen: v7x
topology: tpu7x:2x2x1
jax: 0.10.0
libtpu: 0.0.40
codegen_flags: <defaults>
</compile_context>

<pallas_src>
import functools

import jax
import jax.numpy as jnp
import numpy as np
from jax import lax
from jax.experimental import pallas as pl
from jax.experimental.pallas import tpu as pltpu


# --------------------------------------------------------------------------
# pltpu.roll rotation-direction probe (guards against convention differences
# across Pallas versions; runs one tiny kernel once).
# --------------------------------------------------------------------------
_ROLL_PLUS_ONE_IS_PREV = None


def _roll_plus_one_is_prev():
    """True iff pltpu.roll(x, +1, axis)[i] == x[i-1] (jnp.roll convention)."""
    global _ROLL_PLUS_ONE_IS_PREV
    if _ROLL_PLUS_ONE_IS_PREV is None:
        def probe(x_ref, o_ref):
            o_ref[...] = pltpu.roll(x_ref[...], 1, 0)

        x = jnp.broadcast_to(jnp.arange(8, dtype=jnp.int32)[:, None], (8, 128))
        r = pl.pallas_call(
            probe, out_shape=jax.ShapeDtypeStruct((8, 128), jnp.int32))(x)
        _ROLL_PLUS_ONE_IS_PREV = bool(int(r[1, 0]) == 0)
    return _ROLL_PLUS_ONE_IS_PREV


# ----------------------------- Pallas kernel -----------------------------
def _decoder_kernel(p2_ref, p3_ref, p4_ref,
                    w2_ref, w3_ref, w4a_ref, w4b_ref,
                    gamma_ref, beta_ref, wp_ref, bp_ref,
                    uh3_ref, uh4_ref,
                    o_ref,
                    p2s_ref, p3s_ref, p4s_ref, pad4_ref,
                    *, G, lf_shift):
    H, W, K = o_ref.shape[1], o_ref.shape[2], o_ref.shape[3]
    D = wp_ref.shape[0]
    h3, w3 = p3_ref.shape[1], p3_ref.shape[2]
    h4, w4 = p4_ref.shape[1], p4_ref.shape[2]

    gamma = gamma_ref[...]          # (4, D) f32, rows = [p2, p3, p4-a, p4-b]
    beta = beta_ref[...]            # (4, D) f32

    # --- in-kernel halo: zero-bordered VMEM scratch, no host-side jnp.pad ---
    def fill_halo(dst_ref, src_ref, h, w):
        dst_ref[...] = jnp.zeros_like(dst_ref)          # whole-tile memset
        dst_ref[1:h + 1, 1:w + 1, :] = src_ref[0]       # interior copy

    # --- 3x3 conv: 9 per-tap MXU matmuls streamed into an f32 accumulator ---
    # (no im2col buffer, no lane concats; taps sliced directly off the Ref).
    # v6e/v7x note: at C=256 each tap gives the full 256 contraction depth;
    # at C=64 grouping 4 taps per matmul would restore MXU K-density.
    def conv3x3(src_ref, w_ref_, h, w):
        cin = src_ref.shape[-1]
        acc = None
        for ky in range(3):
            for kx in range(3):
                tap = src_ref[ky:ky + h, kx:kx + w, :].reshape(h * w, cin)
                part = jnp.dot(tap, w_ref_[ky, kx],
                               preferred_element_type=jnp.float32)
                acc = part if acc is None else acc + part
        return acc                                      # (h*w, D) f32

    # --- GroupNorm + ReLU: single-pass stats, folded scale/shift, EUP rsqrt --
    def gn_relu(y, gi):
        n, d = y.shape
        cg = d // G
        s1 = jnp.sum(y, axis=0, keepdims=True)           # (1, D)
        s2 = jnp.sum(y * y, axis=0, keepdims=True)       # (1, D)
        g1 = jnp.sum(s1.reshape(1, G, cg), axis=2, keepdims=True)
        g2 = jnp.sum(s2.reshape(1, G, cg), axis=2, keepdims=True)
        cnt = float(n * cg)
        mean = g1 / cnt
        var = g2 / cnt - mean * mean
        inv = lax.rsqrt(var + 1e-5)                      # EUP
        inv = jnp.broadcast_to(inv, (1, G, cg)).reshape(1, d)
        mean = jnp.broadcast_to(mean, (1, G, cg)).reshape(1, d)
        scale = gamma[gi:gi + 1, :] * inv
        shift = beta[gi:gi + 1, :] - mean * scale
        return jnp.maximum(y * scale + shift, 0.0)

    # --- bilinear x2 upsample (align_corners=False) ---
    # W direction: neighbours via pltpu.roll on the flattened (h*w, D) array
    # (sublane rotate on the XLU slot) + iota boundary mask; blend, interleave
    # even/odd columns at LOW row resolution.  H direction: one bf16 MXU
    # matmul with the precomputed (2h, h) interpolation matrix.
    def up2x(x, h, w, uh_ref):
        n, d = x.shape
        col = lax.broadcasted_iota(jnp.int32, (n, 1), 0) % w
        lf = jnp.where(col == 0, x, pltpu.roll(x, lf_shift % n, 0))
        rt = jnp.where(col == w - 1, x, pltpu.roll(x, (-lf_shift) % n, 0))
        ev = 0.75 * x + 0.25 * lf                        # even output cols
        od = 0.75 * x + 0.25 * rt                        # odd output cols
        y = jnp.concatenate(
            [ev.reshape(h, w, 1, d), od.reshape(h, w, 1, d)],
            axis=2).reshape(h, 2 * w * d)
        return jnp.dot(uh_ref[...], y.astype(jnp.bfloat16),
                       preferred_element_type=jnp.float32)  # (2h, 2w*d) f32

    # --- head 0 (p2, stride == common_stride): conv -> GN -> ReLU ----------
    fill_halo(p2s_ref, p2_ref, H, W)
    acc = gn_relu(conv3x3(p2s_ref, w2_ref, H, W), 0)     # (H*W, D) f32

    # --- head 1 (p3): conv -> GN -> ReLU -> up2x, streamed into acc --------
    fill_halo(p3s_ref, p3_ref, h3, w3)
    z = gn_relu(conv3x3(p3s_ref, w3_ref, h3, w3), 1)
    acc = acc + up2x(z, h3, w3, uh3_ref).reshape(H * W, D)

    # --- head 2 (p4): conv->GN->ReLU->up2x->conv->GN->ReLU->up2x -----------
    fill_halo(p4s_ref, p4_ref, h4, w4)
    u = gn_relu(conv3x3(p4s_ref, w4a_ref, h4, w4), 2)
    u = up2x(u, h4, w4, uh4_ref).reshape(h3, w3, D)
    pad4_ref[...] = jnp.zeros_like(pad4_ref)             # haloed VMEM scratch
    pad4_ref[1:h3 + 1, 1:w3 + 1, :] = u.astype(pad4_ref.dtype)
    u = gn_relu(conv3x3(pad4_ref, w4b_ref, h3, w3), 3)
    acc = acc + up2x(u, h3, w3, uh3_ref).reshape(H * W, D)

    # --- 1x1 predictor with bias, bf16 NHWC store ---------------------------
    s = acc.astype(jnp.bfloat16)
    out = jnp.dot(s, wp_ref[...], preferred_element_type=jnp.float32)
    out = out + bp_ref[...]                              # (1, K) bias
    o_ref[0] = out.reshape(H, W, K).astype(o_ref.dtype)


# ----------------------------- host wrapper -------------------------------
def _bilinear_up2_matrix(n):
    """(2n, n) interpolation matrix for x2 bilinear, align_corners=False."""
    m = np.zeros((2 * n, n), np.float32)
    for o in range(2 * n):
        src = max((o + 0.5) * 0.5 - 0.5, 0.0)
        i0 = int(np.floor(src))
        i1 = min(i0 + 1, n - 1)
        f = src - i0
        m[o, i0] += 1.0 - f
        m[o, i1] += f
    return m


def _vmem_limit_bytes():
    """Per-generation scoped-VMEM budget (48 MiB on v7x, ~96 MiB on v5e/v6e)."""
    try:
        cap = int(pltpu.get_tpu_info().vmem_capacity_bytes)
    except Exception:
        try:
            kind = jax.devices()[0].device_kind.lower()
            cap = (64 * 1024 * 1024 if ("v7" in kind or "tpu7" in kind)
                   else 128 * 1024 * 1024)
        except Exception:
            cap = 64 * 1024 * 1024
    if cap >= 96 * 1024 * 1024:
        return 96 * 1024 * 1024
    return 48 * 1024 * 1024


@functools.partial(jax.jit, static_argnums=(11, 12))
def _decoder_forward_jit(p2, p3, p4, w2, w3a, w4a, w4b, gamma, beta, wp, bp,
                         num_groups, lf_shift):
    B, C, H, W = p2.shape
    D = w2.shape[0]
    K = wp.shape[0]
    h3, w3 = p3.shape[2], p3.shape[3]
    h4, w4 = p4.shape[2], p4.shape[3]
    assert H == 2 * h3 == 4 * h4 and W == 2 * w3 == 4 * w4
    assert D % num_groups == 0

    def prep_feat(x):   # NCHW f32 -> NHWC bf16 (one fused pass under jit)
        return jnp.transpose(x, (0, 2, 3, 1)).astype(jnp.bfloat16)

    def prep_conv(w):   # OIHW -> (3, 3, Cin, Cout) bf16, tap-major layout
        return jnp.transpose(w, (2, 3, 1, 0)).astype(jnp.bfloat16)

    p2n, p3n, p4n = prep_feat(p2), prep_feat(p3), prep_feat(p4)
    w2c, w3c, w4ac, w4bc = (prep_conv(w2), prep_conv(w3a),
                            prep_conv(w4a), prep_conv(w4b))
    wpc = jnp.transpose(wp, (1, 0)).astype(jnp.bfloat16)   # (D, K)
    bpc = bp.reshape(1, K).astype(jnp.float32)
    gammaf = gamma.astype(jnp.float32)
    betaf = beta.astype(jnp.float32)
    uh3 = jnp.asarray(_bilinear_up2_matrix(h3), jnp.bfloat16)   # (H, h3)
    uh4 = jnp.asarray(_bilinear_up2_matrix(h4), jnp.bfloat16)   # (h3, h4)

    kernel = functools.partial(_decoder_kernel, G=num_groups,
                               lf_shift=lf_shift)

    out = pl.pallas_call(
        kernel,
        out_shape=jax.ShapeDtypeStruct((B, H, W, K), jnp.bfloat16),
        grid_spec=pltpu.PrefetchScalarGridSpec(
            num_scalar_prefetch=0,
            grid=(B,),
            in_specs=[
                pl.BlockSpec((1, H, W, C), lambda b: (b, 0, 0, 0)),
                pl.BlockSpec((1, h3, w3, C), lambda b: (b, 0, 0, 0)),
                pl.BlockSpec((1, h4, w4, C), lambda b: (b, 0, 0, 0)),
                # TODO(synk): on v7x give these constant-index operands
                # pipeline_mode=pl.Buffered(1) (or load once via pl.ANY +
                # sync_copy) when bands are sized to fill the 64 MiB VMEM.
                pl.BlockSpec((3, 3, C, D), lambda b: (0, 0, 0, 0)),
                pl.BlockSpec((3, 3, C, D), lambda b: (0, 0, 0, 0)),
                pl.BlockSpec((3, 3, C, D), lambda b: (0, 0, 0, 0)),
                pl.BlockSpec((3, 3, D, D), lambda b: (0, 0, 0, 0)),
                pl.BlockSpec((4, D), lambda b: (0, 0)),
                pl.BlockSpec((4, D), lambda b: (0, 0)),
                pl.BlockSpec((D, K), lambda b: (0, 0)),
                pl.BlockSpec((1, K), lambda b: (0, 0)),
                pl.BlockSpec((2 * h3, h3), lambda b: (0, 0)),
                pl.BlockSpec((2 * h4, h4), lambda b: (0, 0)),
            ],
            out_specs=pl.BlockSpec((1, H, W, K), lambda b: (b, 0, 0, 0)),
            scratch_shapes=[
                pltpu.VMEM((H + 2, W + 2, C), jnp.bfloat16),     # p2 + halo
                pltpu.VMEM((h3 + 2, w3 + 2, C), jnp.bfloat16),   # p3 + halo
                pltpu.VMEM((h4 + 2, w4 + 2, C), jnp.bfloat16),   # p4 + halo
                pltpu.VMEM((h3 + 2, w3 + 2, D), jnp.bfloat16),   # head-2 mid
            ]),
        compiler_params=pltpu.CompilerParams(
            dimension_semantics=("parallel",),
            vmem_limit_bytes=_vmem_limit_bytes()),
    )(p2n, p3n, p4n, w2c, w3c, w4ac, w4bc, gammaf, betaf, wpc, bpc, uh3, uh4)

    # Output stays NHWC bf16 (no post-call transpose / f32 writeback).
    return out


def decoder_forward(p2, p3, p4, w2, w3a, w4a, w4b, gamma, beta, wp, bp,
                    num_groups=32, output_layout="NHWC"):
    """Features NCHW (PyTorch layout), conv weights OIHW, predictor (K, D).

    Returns (B, H, W, num_classes) bf16 by default (NHWC is the intended
    downstream layout; requesting "NCHW" adds an extra HBM traversal)."""
    lf_shift = 1 if _roll_plus_one_is_prev() else -1
    out = _decoder_forward_jit(p2, p3, p4, w2, w3a, w4a, w4b, gamma, beta,
                               wp, bp, num_groups, lf_shift)
    if output_layout == "NCHW":
        out = jnp.transpose(out, (0, 3, 1, 2))
    return out


# -------------------- pure-JAX f32 reference (PyTorch semantics) ----------
def _ref_conv3x3(x, w_oihw):
    return lax.conv_general_dilated(
        x, w_oihw, (1, 1), ((1, 1), (1, 1)),
        dimension_numbers=('NCHW', 'OIHW', 'NCHW'))


def _ref_gn_relu(y, gamma, beta, G, eps=1e-5):
    B, C, H, W = y.shape
    yg = y.reshape(B, G, C // G, H, W)
    m = jnp.mean(yg, axis=(2, 3, 4), keepdims=True)
    v = jnp.mean((yg - m) ** 2, axis=(2, 3, 4), keepdims=True)
    yn = ((yg - m) / jnp.sqrt(v + eps)).reshape(B, C, H, W)
    yn = yn * gamma[None, :, None, None] + beta[None, :, None, None]
    return jnp.maximum(yn, 0.0)


def _ref_up2x(x):
    # bilinear x2, align_corners=False (PyTorch nn.Upsample semantics)
    def idx(n):
        src = (np.arange(2 * n) + 0.5) * 0.5 - 0.5
        src = np.maximum(src, 0.0)
        i0 = np.floor(src).astype(np.int32)
        i1 = np.minimum(i0 + 1, n - 1)
        f = (src - i0).astype(np.float32)
        return i0, i1, f

    B, C, H, W = x.shape
    i0, i1, f = idx(H)
    x = (x[:, :, i0, :] * (1.0 - f)[None, None, :, None]
         + x[:, :, i1, :] * f[None, None, :, None])
    j0, j1, g = idx(W)
    x = (x[:, :, :, j0] * (1.0 - g)[None, None, None, :]
         + x[:, :, :, j1] * g[None, None, None, :])
    return x


def decoder_reference(p2, p3, p4, w2, w3a, w4a, w4b, gamma, beta, wp, bp, G):
    y = _ref_gn_relu(_ref_conv3x3(p2, w2), gamma[0], beta[0], G)
    z = _ref_gn_relu(_ref_conv3x3(p3, w3a), gamma[1], beta[1], G)
    z = _ref_up2x(z)
    u = _ref_gn_relu(_ref_conv3x3(p4, w4a), gamma[2], beta[2], G)
    u = _ref_up2x(u)
    u = _ref_gn_relu(_ref_conv3x3(u, w4b), gamma[3], beta[3], G)
    u = _ref_up2x(u)
    x = y + z + u
    out = jnp.einsum('bchw,kc->bkhw', x, wp) + bp[None, :, None, None]
    return out


if __name__ == "__main__":
    B = 2        # batch (grid=(B,) keeps both v7x TensorCores busy)
    C = 64       # FPN feature channels
    D = 128      # DECODER_CONV_DIMS   (lane-dense, divisible by 32 groups)
    K = 128      # DECODER_NUM_CLASSES (lane-dense output store)
    G = 32       # GroupNorm groups (norm = "GN")
    H = W = 16   # p2 spatial size (common_stride level)

    key = jax.random.PRNGKey(0)
    ks = jax.random.split(key, 11)
    p2 = jax.random.normal(ks[0], (B, C, H, W), jnp.float32)
    p3 = jax.random.normal(ks[1], (B, C, H // 2, W // 2), jnp.float32)
    p4 = jax.random.normal(ks[2], (B, C, H // 4, W // 4), jnp.float32)
    w2 = 0.1 * jax.random.normal(ks[3], (D, C, 3, 3), jnp.float32)
    w3a = 0.1 * jax.random.normal(ks[4], (D, C, 3, 3), jnp.float32)
    w4a = 0.1 * jax.random.normal(ks[5], (D, C, 3, 3), jnp.float32)
    w4b = 0.1 * jax.random.normal(ks[6], (D, D, 3, 3), jnp.float32)
    gamma = 1.0 + 0.1 * jax.random.normal(ks[7], (4, D), jnp.float32)
    beta = 0.1 * jax.random.normal(ks[8], (4, D), jnp.float32)
    wp = 0.1 * jax.random.normal(ks[9], (K, D), jnp.float32)
    bp = 0.1 * jax.random.normal(ks[10], (K,), jnp.float32)

    out = decoder_forward(p2, p3, p4, w2, w3a, w4a, w4b, gamma, beta, wp, bp,
                          num_groups=G)                  # NHWC bf16
    out = jax.block_until_ready(out)

    ref = jax.block_until_ready(
        decoder_reference(p2, p3, p4, w2, w3a, w4a, w4b, gamma, beta, wp, bp,
                          G))
    ref_nhwc = jnp.transpose(ref, (0, 2, 3, 1))

    assert out.shape == (B, H, W, K)
    assert out.dtype == jnp.bfloat16
    # kernel runs matmuls on the bf16 MXU (f32 accumulation) and stores a bf16
    # output; compare against the f32 reference with bf16-appropriate tolerances.
    np.testing.assert_allclose(np.asarray(out).astype(np.float32),
                               np.asarray(ref_nhwc),
                               rtol=6e-2, atol=6e-2)
    print("KERNEL_OK")
</pallas_src>

<mosaic_0001>
module attributes {stable_mosaic.version = 11 : i64} {
  func.func @probe(%arg0: memref<8x128xi32, #tpu.memory_space<vmem>>, %arg1: memref<8x128xi32, #tpu.memory_space<vmem>>) attributes {dimension_semantics = [], scalar_prefetch = 0 : i64, scratch_operands = 0 : i64, tpu.core_type = #tpu.core_type<tc>} {
    %c0 = arith.constant 0 : index
    %c0_0 = arith.constant 0 : index
    %0 = vector.load %arg0[%c0, %c0_0] : memref<8x128xi32, #tpu.memory_space<vmem>>, vector<8x128xi32>
    %c1_i32 = arith.constant 1 : i32
    %1 = tpu.dynamic_rotate %0 by %c1_i32 dim 0 : vector<8x128xi32>, i32 -> vector<8x128xi32>
    %c0_1 = arith.constant 0 : index
    %c0_2 = arith.constant 0 : index
    %2 = vector.load %arg1[%c0_1, %c0_2] : memref<8x128xi32, #tpu.memory_space<vmem>>, vector<8x128xi32>
    tpu.vector_store %arg1[%c0_1, %c0_2], %1 {strides = array<i32>} : memref<8x128xi32, #tpu.memory_space<vmem>>, vector<8x128xi32>,
    return
  }
}

</mosaic_0001>

<llo_original>
// kernel: tpu_custom_call.1
$region0: #{tpu_custom_call.1}
  #allocation0 [shape = 'u32[]', space=smem, size = 0x4, offset = 0x4, fixed_abs, tag = 'smem constant byte address 0x4 - core index']
  #allocation1 [shape = 'u32[144,128]{1,0:T(1,128)}', space=vmem, size = 0x12000, scoped, tag = 'internal scratch']
  %s0 = inlined_call_operand.hbm [shape: s32[8,128], index: 0, kind: input, shape index: {}]
  %s1 = inlined_call_operand.hbm [shape: s32[8,128], index: 1, kind: output, shape index: {}]
  %s2 = sld [smem:[#allocation0]]
  $region18: #{tpu_custom_call.1} parent=0
    _
  %s4 = ssub.s32 1, %s2
  %s5 = scalar_select 0, %s4, %s2
  $region1: #{tpu_custom_call.1} parent=0
    #allocation2 [shape = 'u8[4096]{0}', space=vmem, size = 0x1000, scoped, tag = 'input window, operand 0, single buffered']
    #allocation3 [shape = 's32[1]{0}', space=sflag, size = 0x4, scoped, tag = 'scoped memory for tpu_custom_call.1']
    #allocation4 [shape = 's32[1]{0}', space=sflag, size = 0x4, scoped, tag = 'scoped memory for tpu_custom_call.1']
    #allocation5 [shape = 'u8[4096]{0}', space=vmem, size = 0x1000, scoped, tag = 'output window, operand 0, single buffered']
    %6 = vsyncpa [#allocation3], 0
    %7 = vsyncpa [#allocation4], 0
    // Predicated region
    $region2: #{tpu_custom_call.1} parent=1 // pred_check
      _
    $region3: #{tpu_custom_call.1} parent=1 // pred_check_branch
      %9 = sbr.rel (0) target = $region5
    $region4: #{tpu_custom_call.1} parent=1 // pred_region
      %s11 = ssub.s32 128, 128
      %12 = vsyncadd [#allocation3], %s11
      %s14 = sshll.u32 [#allocation2], 4
      %s15 = int_to_ptr.vmem [resolvable:$true] %s14
      %17 = dma.hbm_to_vmem [thread:$0]  %s0, 128, %s15, [#allocation3]
    $region5: #{tpu_custom_call.1} parent=1 // pred_fallthru
      _
    // Predicated region
    $region6: #{tpu_custom_call.1} parent=1 // pred_check
      _
    $region7: #{tpu_custom_call.1} parent=1 // pred_check_branch
      %19 = sbr.rel (0) target = $region9
    $region8: #{tpu_custom_call.1} parent=1 // pred_region
      %20 = dma.done [#allocation3], 128
    $region9: #{tpu_custom_call.1} parent=1 // pred_fallthru
      _
    %v21 = vld [vmem:[#allocation2] sm:$0xff]
    %v22 = vrot.slane %v21, 7
    %23 = vst [vmem:[#allocation5] sm:$0xff] %v22
    // Predicated region
    $region10: #{tpu_custom_call.1} parent=1 // pred_check
      _
    $region11: #{tpu_custom_call.1} parent=1 // pred_check_branch
      %25 = sbr.rel (0) target = $region13
    $region12: #{tpu_custom_call.1} parent=1 // pred_region
      %s27 = ssub.s32 128, 128
      %28 = vsyncadd [#allocation4], %s27
      %s30 = sshll.u32 [#allocation5], 4
      %s31 = int_to_ptr.vmem [resolvable:$true] %s30
      %33 = dma.vmem_to_hbm [thread:$0]  %s31, 128, %s1, [#allocation4]
    $region13: #{tpu_custom_call.1} parent=1 // pred_fallthru
      _
    // Predicated region
    $region14: #{tpu_custom_call.1} parent=1 // pred_check
      _
    $region15: #{tpu_custom_call.1} parent=1 // pred_check_branch
      %35 = sbr.rel (0) target = $region17
    $region16: #{tpu_custom_call.1} parent=1 // pred_region
      %36 = dma.done [#allocation4], 128
    $region17: #{tpu_custom_call.1} parent=1 // pred_fallthru
      _
    %37 = vsyncpa [#allocation3], 1
    %38 = vsyncpa [#allocation4], 1

</llo_original>
